<compile_context>
chip_gen: v7x
topology: tpu7x:2x2x1
jax: 0.10.0
libtpu: 0.0.40
codegen_flags: <defaults>
</compile_context>

<pallas_src>
import functools

import numpy as np
import jax
import jax.numpy as jnp
from jax import lax
from jax.experimental import pallas as pl
from jax.experimental.pallas import tpu as pltpu


# ---------------------------------------------------------------------------
# Pallas kernel: forward pass for B_blk batch elements, channel-first.
#   x_ref   : (B_blk, C_in, L)
#   w1_ref  : (F, K*C_in)   w2_ref : (F, K*F)   w3_ref : (F, C_in)
#   b*_ref  : (F, 1)
#   pw_ref  : (S+1, L2)     adaptive-pool offset weights
#   o_ref   : (B_blk, F, L2_pad)
#   scratch : s1 (K*C_in, L1), s2 (K*F, L2), pool (C_in, L2), obuf (F, L2_pad)
# ---------------------------------------------------------------------------
def tcn_block_kernel(x_ref, w1_ref, b1_ref, w2_ref, b2_ref, w3_ref, b3_ref,
                     pw_ref, o_ref, s1_ref, s2_ref, pool_ref, obuf_ref,
                     *, B_blk, K, D, C_in, F, L1, L2, pool_ranges):
    w1 = w1_ref[...]                                   # (F, K*C_in)
    w2 = w2_ref[...]                                   # (F, K*F)
    w3 = w3_ref[...]                                   # (F, C_in)
    b1 = b1_ref[...]                                   # (F, 1)
    b2 = b2_ref[...]
    b3 = b3_ref[...]

    # Zero the lane-dense output staging buffer once per grid step; the pad
    # columns [L2:L2_pad) stay zero, so every store below is a full dense slab.
    obuf_ref[...] = jnp.zeros_like(obuf_ref)

    for b in range(B_blk):                             # static unroll over batch
        xb = x_ref[b]                                  # (C_in, L), f32

        # --- conv1 (weight-normed, dilated, valid): im2col + one MXU dot -----
        for k in range(K):                             # static unroll, K small
            s1_ref[k * C_in:(k + 1) * C_in, :] = xb[:, k * D:k * D + L1]
        h1 = jnp.maximum(
            jnp.dot(w1, s1_ref[...], preferred_element_type=jnp.float32) + b1,
            0.0)                                       # (F, L1), bias + ReLU
        # dropout: identity (eval mode)

        # --- conv2 (weight-normed, dilated, valid): im2col + one MXU dot -----
        for k in range(K):
            s2_ref[k * F:(k + 1) * F, :] = h1[:, k * D:k * D + L2]
        h2 = jnp.maximum(
            jnp.dot(w2, s2_ref[...], preferred_element_type=jnp.float32) + b2,
            0.0)                                       # (F, L2), bias + ReLU
        # dropout: identity (eval mode)

        # --- residual: AdaptiveAvgPool1d(L->L2) on x, then the 1x1 conv -------
        # pooled[:, i] = sum_d pw[d, i] * x[:, i + d]; each offset d only
        # touches its (static, 128-rounded) nonzero column range.
        pool_ref[...] = jnp.zeros_like(pool_ref)
        for d, rng in enumerate(pool_ranges):          # static unroll, S small
            if rng is None:
                continue
            lo, hi = rng
            pool_ref[:, lo:hi] = (pool_ref[:, lo:hi]
                                  + xb[:, lo + d:hi + d] * pw_ref[d:d + 1, lo:hi])
        res = jnp.dot(w3, pool_ref[...],
                      preferred_element_type=jnp.float32) + b3   # (F, L2)

        # --- combine + lane-dense store --------------------------------------
        obuf_ref[:, 0:L2] = res + h2
        o_ref[b] = obuf_ref[...].astype(o_ref.dtype)   # full (F, L2_pad) store


# ---------------------------------------------------------------------------
# Glue: weight norm, pool offset weights, block sizing, pallas_call wrapper.
# ---------------------------------------------------------------------------
def _round_up(x, m):
    return ((x + m - 1) // m) * m


def weight_norm(v, g):
    # PyTorch nn.utils.weight_norm default dim=0: per-output-channel norm.
    norm = jnp.sqrt(jnp.sum(v * v, axis=tuple(range(1, v.ndim)), keepdims=True))
    return g * v / norm


def adaptive_pool_offset_weights(L_in, L_out):
    """Offset-indexed AdaptiveAvgPool1d(L_in -> L_out) weights, shape (S+1, L_out).

    pooled[i] = sum_{d=0}^{S} w[d, i] * x[i + d],  S = L_in - L_out.
    """
    S = L_in - L_out
    w = np.zeros((S + 1, L_out), np.float32)
    for i in range(L_out):
        start = (i * L_in) // L_out
        end = -((-(i + 1) * L_in) // L_out)            # ceil
        inv = 1.0 / (end - start)
        for j in range(start, end):
            w[j - i, i] = inv                          # 0 <= j - i <= S
    return w


def _pool_nonzero_ranges(pw, lane=128):
    """Per-offset nonzero column range, rounded out to 128-lane boundaries."""
    n_off, L_out = pw.shape
    ranges = []
    for d in range(n_off):
        cols = np.nonzero(pw[d])[0]
        if cols.size == 0:
            ranges.append(None)
            continue
        lo = (int(cols[0]) // lane) * lane
        hi = min(L_out, _round_up(int(cols[-1]) + 1, lane))
        ranges.append((lo, hi))
    return tuple(ranges)


def _tpu_vmem_capacity_bytes():
    try:
        cap = int(pltpu.get_tpu_info().vmem_capacity_bytes)
    except Exception:
        cap = 64 * 1024 * 1024                         # conservative fallback (v7x)
    return max(cap, 32 * 1024 * 1024)


def _choose_batch_block(N, C_in, F, L, L2_pad, budget_bytes):
    """Batch elements per grid step: fill the VMEM budget, keep >=2 parallel
    grid steps (v7x has two TensorCores), stay a divisor of N."""
    if N <= 1:
        return 1
    cp, fp, lp = _round_up(C_in, 8), _round_up(F, 8), _round_up(L, 128)
    per_b = 4 * (2 * cp * lp + 2 * fp * L2_pad)        # double-buffered in/out, f32
    cap = max(1, budget_bytes // per_b)
    cap = min(cap, 32, max(1, N // 2))                 # >=2 steps; bound unroll size
    b_blk = 1
    for d in range(1, cap + 1):                        # largest divisor of N <= cap
        if N % d == 0:
            b_blk = d
    return b_blk


def basic_tcn_block(x_ncl, params, *, kernel_size, dilation):
    N, C_in, L = x_ncl.shape
    K, D = kernel_size, dilation
    L1 = L - D * (K - 1)
    L2 = L1 - D * (K - 1)
    if L2 < 1:
        raise ValueError(
            f"Sequence length L={L} too short for kernel_size={K}, dilation={D} "
            f"(need L > 2*dilation*(kernel_size-1) = {2 * D * (K - 1)}).")
    S = L - L2                                         # = 2*D*(K-1), small & static

    w1 = weight_norm(params["v1"], params["g1"])       # (F, C_in, K)
    w2 = weight_norm(params["v2"], params["g2"])       # (F, F, K)
    w3 = weight_norm(params["v3"], params["g3"])       # (F, C_in, 1)
    F = w1.shape[0]

    # Flattened, kernel-friendly weight layouts (tiny tensors; negligible prep).
    # w1f[f, k*C_in + c] = w1[f, c, k]  (im2col-matched flattening)
    w1f = jnp.transpose(w1, (0, 2, 1)).reshape(F, K * C_in)
    w2f = jnp.transpose(w2, (0, 2, 1)).reshape(F, K * F)
    w3m = w3[:, :, 0]                                  # (F, C_in)
    b1 = params["b1"].reshape(F, 1)
    b2 = params["b2"].reshape(F, 1)
    b3 = params["b3"].reshape(F, 1)

    pw_np = adaptive_pool_offset_weights(L, L2)        # (S+1, L2), numpy
    # Invariant guard for the pool/conv3 reorder (see header comment).
    assert np.allclose(pw_np.sum(axis=0), 1.0, atol=1e-6), "pool rows must sum to 1"
    pool_ranges = _pool_nonzero_ranges(pw_np)
    pw = jnp.asarray(pw_np)

    L2_pad = _round_up(L2, 128)                        # lane-dense output stores
    vmem_cap = _tpu_vmem_capacity_bytes()
    vmem_limit = min(vmem_cap // 2, 64 * 1024 * 1024)
    B_blk = _choose_batch_block(N, C_in, F, L, L2_pad, budget_bytes=vmem_cap // 4)
    G = N // B_blk

    kern = functools.partial(
        tcn_block_kernel, B_blk=B_blk, K=K, D=D, C_in=C_in, F=F,
        L1=L1, L2=L2, pool_ranges=pool_ranges)

    out = pl.pallas_call(
        kern,
        out_shape=jax.ShapeDtypeStruct((N, F, L2_pad), x_ncl.dtype),
        grid_spec=pltpu.PrefetchScalarGridSpec(
            num_scalar_prefetch=0,
            grid=(G,),
            in_specs=[
                pl.BlockSpec((B_blk, C_in, L), lambda g: (g, 0, 0)),   # x (NCL)
                pl.BlockSpec((F, K * C_in), lambda g: (0, 0)),         # w1 flat
                pl.BlockSpec((F, 1), lambda g: (0, 0)),                # b1
                pl.BlockSpec((F, K * F), lambda g: (0, 0)),            # w2 flat
                pl.BlockSpec((F, 1), lambda g: (0, 0)),                # b2
                pl.BlockSpec((F, C_in), lambda g: (0, 0)),             # w3
                pl.BlockSpec((F, 1), lambda g: (0, 0)),                # b3
                pl.BlockSpec((S + 1, L2), lambda g: (0, 0)),           # pool weights
            ],
            out_specs=pl.BlockSpec((B_blk, F, L2_pad), lambda g: (g, 0, 0)),
            scratch_shapes=[
                pltpu.VMEM((K * C_in, L1), jnp.float32),   # conv1 im2col stack
                pltpu.VMEM((K * F, L2), jnp.float32),      # conv2 im2col stack
                pltpu.VMEM((C_in, L2), jnp.float32),       # adaptive-pool accum
                pltpu.VMEM((F, L2_pad), jnp.float32),      # lane-dense out staging
            ],
        ),
        compiler_params=pltpu.CompilerParams(
            dimension_semantics=("parallel",),
            vmem_limit_bytes=vmem_limit),
    )(x_ncl, w1f, b1, w2f, b2, w3m, b3, pw)

    return out[:, :, :L2]                              # (N, F, L2) — NCL


# ---------------------------------------------------------------------------
# Pure-JAX reference (independent path via lax.conv_general_dilated).
# ---------------------------------------------------------------------------
def reference_forward(x_ncl, params, *, kernel_size, dilation):
    K, D = kernel_size, dilation
    w1 = weight_norm(params["v1"], params["g1"])
    w2 = weight_norm(params["v2"], params["g2"])
    w3 = weight_norm(params["v3"], params["g3"])
    dn = ("NCH", "OIH", "NCH")

    x = lax.conv_general_dilated(x_ncl, w1, (1,), "VALID",
                                 rhs_dilation=(D,), dimension_numbers=dn)
    x = jax.nn.relu(x + params["b1"][None, :, None])
    x = lax.conv_general_dilated(x, w2, (1,), "VALID",
                                 rhs_dilation=(D,), dimension_numbers=dn)
    x = jax.nn.relu(x + params["b2"][None, :, None])

    res = lax.conv_general_dilated(x_ncl, w3, (1,), "VALID",
                                   rhs_dilation=(D,), dimension_numbers=dn)
    res = res + params["b3"][None, :, None]

    L_in, L_out = x_ncl.shape[-1], x.shape[-1]
    P = np.zeros((L_out, L_in), np.float32)            # reference-only dense pool
    for i in range(L_out):
        s = (i * L_in) // L_out
        e = -((-(i + 1) * L_in) // L_out)
        P[i, s:e] = 1.0 / (e - s)
    res = jnp.einsum("ij,nfj->nfi", jnp.asarray(P), res)
    return res + x


# ---------------------------------------------------------------------------
if __name__ == "__main__":
    # small shapes consistent with the module
    N, C_in, L = 2, 4, 16
    F, K, D = 8, 3, 2           # filter_num, kernel_size, dilation_rate
    # use_bias=True; dropout_rate irrelevant in eval mode (identity)

    key = jax.random.PRNGKey(0)
    ks = jax.random.split(key, 8)
    params = {
        "v1": jax.random.normal(ks[0], (F, C_in, K), jnp.float32) * 0.2,
        "g1": jax.random.normal(ks[1], (F, 1, 1), jnp.float32) * 0.5 + 1.0,
        "b1": jax.random.normal(ks[2], (F,), jnp.float32) * 0.1,
        "v2": jax.random.normal(ks[3], (F, F, K), jnp.float32) * 0.2,
        "g2": jax.random.normal(ks[4], (F, 1, 1), jnp.float32) * 0.5 + 1.0,
        "b2": jax.random.normal(ks[5], (F,), jnp.float32) * 0.1,
        "v3": jax.random.normal(ks[6], (F, C_in, 1), jnp.float32) * 0.2,
        "g3": jnp.ones((F, 1, 1), jnp.float32),
        "b3": jax.random.normal(ks[7], (F,), jnp.float32) * 0.1,
    }
    x = jax.random.normal(jax.random.PRNGKey(42), (N, C_in, L), jnp.float32)

    out = basic_tcn_block(x, params, kernel_size=K, dilation=D)
    out = jax.block_until_ready(out)

    ref = reference_forward(x, params, kernel_size=K, dilation=D)
    assert out.shape == ref.shape, (out.shape, ref.shape)
    assert jnp.allclose(out, ref, atol=1e-4, rtol=1e-4), \
        float(jnp.max(jnp.abs(out - ref)))

    print("KERNEL_OK")
</pallas_src>

<mosaic_0001>
module attributes {stable_mosaic.version = 11 : i64} {
  func.func @tcn_block_kernel(%arg0: i32, %arg1: memref<1x4x16xf32, #tpu.memory_space<vmem>>, %arg2: memref<8x12xf32, #tpu.memory_space<vmem>>, %arg3: memref<8x1xf32, #tpu.memory_space<vmem>>, %arg4: memref<8x24xf32, #tpu.memory_space<vmem>>, %arg5: memref<8x1xf32, #tpu.memory_space<vmem>>, %arg6: memref<8x4xf32, #tpu.memory_space<vmem>>, %arg7: memref<8x1xf32, #tpu.memory_space<vmem>>, %arg8: memref<9x8xf32, #tpu.memory_space<vmem>>, %arg9: memref<1x8x128xf32, #tpu.memory_space<vmem>>, %arg10: memref<12x12xf32, #tpu.memory_space<vmem>>, %arg11: memref<24x8xf32, #tpu.memory_space<vmem>>, %arg12: memref<4x8xf32, #tpu.memory_space<vmem>>, %arg13: memref<8x128xf32, #tpu.memory_space<vmem>>) attributes {dimension_semantics = [#tpu.dimension_semantics<parallel>], iteration_bounds = array<i64: 2>, scalar_prefetch = 0 : i64, scratch_operands = 4 : i64, tpu.core_type = #tpu.core_type<tc>, window_params = [{transform_indices = @transform_0, window_bounds = array<i64: 1, 4, 16>}, {pipeline_mode = #tpu.pipeline_mode<synchronous>, transform_indices = @transform_1, window_bounds = array<i64: 8, 12>}, {pipeline_mode = #tpu.pipeline_mode<synchronous>, transform_indices = @transform_2, window_bounds = array<i64: 8, 1>}, {pipeline_mode = #tpu.pipeline_mode<synchronous>, transform_indices = @transform_3, window_bounds = array<i64: 8, 24>}, {pipeline_mode = #tpu.pipeline_mode<synchronous>, transform_indices = @transform_4, window_bounds = array<i64: 8, 1>}, {pipeline_mode = #tpu.pipeline_mode<synchronous>, transform_indices = @transform_5, window_bounds = array<i64: 8, 4>}, {pipeline_mode = #tpu.pipeline_mode<synchronous>, transform_indices = @transform_6, window_bounds = array<i64: 8, 1>}, {pipeline_mode = #tpu.pipeline_mode<synchronous>, transform_indices = @transform_7, window_bounds = array<i64: 9, 8>}, {transform_indices = @transform_8, window_bounds = array<i64: 1, 8, 128>}]} {
    %c0 = arith.constant 0 : index
    %c0_0 = arith.constant 0 : index
    %0 = vector.load %arg2[%c0, %c0_0] : memref<8x12xf32, #tpu.memory_space<vmem>>, vector<8x12xf32>
    %c0_1 = arith.constant 0 : index
    %c0_2 = arith.constant 0 : index
    %1 = vector.load %arg4[%c0_1, %c0_2] : memref<8x24xf32, #tpu.memory_space<vmem>>, vector<8x24xf32>
    %c0_3 = arith.constant 0 : index
    %c0_4 = arith.constant 0 : index
    %2 = vector.load %arg6[%c0_3, %c0_4] : memref<8x4xf32, #tpu.memory_space<vmem>>, vector<8x4xf32>
    %c0_5 = arith.constant 0 : index
    %c0_6 = arith.constant 0 : index
    %3 = vector.load %arg3[%c0_5, %c0_6] : memref<8x1xf32, #tpu.memory_space<vmem>>, vector<8x1xf32>
    %c0_7 = arith.constant 0 : index
    %c0_8 = arith.constant 0 : index
    %4 = vector.load %arg5[%c0_7, %c0_8] : memref<8x1xf32, #tpu.memory_space<vmem>>, vector<8x1xf32>
    %c0_9 = arith.constant 0 : index
    %c0_10 = arith.constant 0 : index
    %5 = vector.load %arg7[%c0_9, %c0_10] : memref<8x1xf32, #tpu.memory_space<vmem>>, vector<8x1xf32>
    %cst = arith.constant 0.000000e+00 : f32
    %6 = vector.broadcast %cst : f32 to vector<8x128xf32>
    %c0_11 = arith.constant 0 : index
    %c0_12 = arith.constant 0 : index
    %7 = vector.load %arg13[%c0_11, %c0_12] : memref<8x128xf32, #tpu.memory_space<vmem>>, vector<8x128xf32>
    tpu.vector_store %arg13[%c0_11, %c0_12], %6 {strides = array<i32>} : memref<8x128xf32, #tpu.memory_space<vmem>>, vector<8x128xf32>,
    %c0_13 = arith.constant 0 : index
    %c0_14 = arith.constant 0 : index
    %c0_15 = arith.constant 0 : index
    %8 = vector.load %arg1[%c0_13, %c0_14, %c0_15] : memref<1x4x16xf32, #tpu.memory_space<vmem>>, vector<1x4x16xf32>
    %9 = vector.shape_cast %8 : vector<1x4x16xf32> to vector<4x16xf32>
    %10 = vector.extract_strided_slice %9 {offsets = [0, 0], sizes = [4, 12], strides = [1, 1]} : vector<4x16xf32> to vector<4x12xf32>
    %c0_16 = arith.constant 0 : index
    %c0_17 = arith.constant 0 : index
    %11 = vector.load %arg10[%c0_16, %c0_17] : memref<12x12xf32, #tpu.memory_space<vmem>>, vector<4x12xf32>
    tpu.vector_store %arg10[%c0_16, %c0_17], %10 {strides = array<i32>} : memref<12x12xf32, #tpu.memory_space<vmem>>, vector<4x12xf32>,
    %12 = vector.extract_strided_slice %9 {offsets = [0, 2], sizes = [4, 12], strides = [1, 1]} : vector<4x16xf32> to vector<4x12xf32>
    %c4 = arith.constant 4 : index
    %c0_18 = arith.constant 0 : index
    %13 = vector.load %arg10[%c4, %c0_18] : memref<12x12xf32, #tpu.memory_space<vmem>>, vector<4x12xf32>
    tpu.vector_store %arg10[%c4, %c0_18], %12 {strides = array<i32>} : memref<12x12xf32, #tpu.memory_space<vmem>>, vector<4x12xf32>,
    %14 = vector.extract_strided_slice %9 {offsets = [0, 4], sizes = [4, 12], strides = [1, 1]} : vector<4x16xf32> to vector<4x12xf32>
    %c8 = arith.constant 8 : index
    %c0_19 = arith.constant 0 : index
    %15 = vector.load %arg10[%c8, %c0_19] : memref<12x12xf32, #tpu.memory_space<vmem>>, vector<4x12xf32>
    tpu.vector_store %arg10[%c8, %c0_19], %14 {strides = array<i32>} : memref<12x12xf32, #tpu.memory_space<vmem>>, vector<4x12xf32>,
    %c0_20 = arith.constant 0 : index
    %c0_21 = arith.constant 0 : index
    %16 = vector.load %arg10[%c0_20, %c0_21] : memref<12x12xf32, #tpu.memory_space<vmem>>, vector<12x12xf32>
    %cst_22 = arith.constant dense<0.000000e+00> : vector<8x12xf32>
    %17 = tpu.matmul %0, %16, %cst_22 {dimension_numbers = #tpu.dot_dimension_numbers<[1], [0], [0], [1], [0, 0, 1, 1], [], []>} : vector<8x12xf32>, vector<12x12xf32>, vector<8x12xf32> -> vector<8x12xf32>
    %18 = vector.broadcast %3 : vector<8x1xf32> to vector<8x12xf32>
    %19 = arith.addf %17, %18 : vector<8x12xf32>
    %cst_23 = arith.constant 0.000000e+00 : f32
    %20 = vector.broadcast %cst_23 : f32 to vector<8x12xf32>
    %21 = arith.maximumf %19, %20 : vector<8x12xf32>
    %22 = vector.extract_strided_slice %21 {offsets = [0, 0], sizes = [8, 8], strides = [1, 1]} : vector<8x12xf32> to vector<8x8xf32>
    %c0_24 = arith.constant 0 : index
    %c0_25 = arith.constant 0 : index
    %23 = vector.load %arg11[%c0_24, %c0_25] : memref<24x8xf32, #tpu.memory_space<vmem>>, vector<8x8xf32>
    tpu.vector_store %arg11[%c0_24, %c0_25], %22 {strides = array<i32>} : memref<24x8xf32, #tpu.memory_space<vmem>>, vector<8x8xf32>,
    %24 = vector.extract_strided_slice %21 {offsets = [0, 2], sizes = [8, 8], strides = [1, 1]} : vector<8x12xf32> to vector<8x8xf32>
    %c8_26 = arith.constant 8 : index
    %c0_27 = arith.constant 0 : index
    %25 = vector.load %arg11[%c8_26, %c0_27] : memref<24x8xf32, #tpu.memory_space<vmem>>, vector<8x8xf32>
    tpu.vector_store %arg11[%c8_26, %c0_27], %24 {strides = array<i32>} : memref<24x8xf32, #tpu.memory_space<vmem>>, vector<8x8xf32>,
    %26 = vector.extract_strided_slice %21 {offsets = [0, 4], sizes = [8, 8], strides = [1, 1]} : vector<8x12xf32> to vector<8x8xf32>
    %c16 = arith.constant 16 : index
    %c0_28 = arith.constant 0 : index
    %27 = vector.load %arg11[%c16, %c0_28] : memref<24x8xf32, #tpu.memory_space<vmem>>, vector<8x8xf32>
    tpu.vector_store %arg11[%c16, %c0_28], %26 {strides = array<i32>} : memref<24x8xf32, #tpu.memory_space<vmem>>, vector<8x8xf32>,
    %c0_29 = arith.constant 0 : index
    %c0_30 = arith.constant 0 : index
    %28 = vector.load %arg11[%c0_29, %c0_30] : memref<24x8xf32, #tpu.memory_space<vmem>>, vector<24x8xf32>
    %cst_31 = arith.constant dense<0.000000e+00> : vector<8x8xf32>
    %29 = tpu.matmul %1, %28, %cst_31 {dimension_numbers = #tpu.dot_dimension_numbers<[1], [0], [0], [1], [0, 0, 1, 1], [], []>} : vector<8x24xf32>, vector<24x8xf32>, vector<8x8xf32> -> vector<8x8xf32>
    %30 = vector.broadcast %4 : vector<8x1xf32> to vector<8x8xf32>
    %31 = arith.addf %29, %30 : vector<8x8xf32>
    %cst_32 = arith.constant 0.000000e+00 : f32
    %32 = vector.broadcast %cst_32 : f32 to vector<8x8xf32>
    %33 = arith.maximumf %31, %32 : vector<8x8xf32>
    %cst_33 = arith.constant 0.000000e+00 : f32
    %34 = vector.broadcast %cst_33 : f32 to vector<4x8xf32>
    %c0_34 = arith.constant 0 : index
    %c0_35 = arith.constant 0 : index
    %35 = vector.load %arg12[%c0_34, %c0_35] : memref<4x8xf32, #tpu.memory_space<vmem>>, vector<4x8xf32>
    tpu.vector_store %arg12[%c0_34, %c0_35], %34 {strides = array<i32>} : memref<4x8xf32, #tpu.memory_space<vmem>>, vector<4x8xf32>,
    %c0_36 = arith.constant 0 : index
    %c0_37 = arith.constant 0 : index
    %36 = vector.load %arg12[%c0_36, %c0_37] : memref<4x8xf32, #tpu.memory_space<vmem>>, vector<4x8xf32>
    %37 = vector.extract_strided_slice %9 {offsets = [0, 0], sizes = [4, 8], strides = [1, 1]} : vector<4x16xf32> to vector<4x8xf32>
    %c0_38 = arith.constant 0 : index
    %c0_39 = arith.constant 0 : index
    %38 = vector.load %arg8[%c0_38, %c0_39] : memref<9x8xf32, #tpu.memory_space<vmem>>, vector<1x8xf32>
    %39 = vector.broadcast %38 : vector<1x8xf32> to vector<4x8xf32>
    %40 = arith.mulf %37, %39 : vector<4x8xf32>
    %41 = arith.addf %36, %40 : vector<4x8xf32>
    %c0_40 = arith.constant 0 : index
    %c0_41 = arith.constant 0 : index
    %42 = vector.load %arg12[%c0_40, %c0_41] : memref<4x8xf32, #tpu.memory_space<vmem>>, vector<4x8xf32>
    tpu.vector_store %arg12[%c0_40, %c0_41], %41 {strides = array<i32>} : memref<4x8xf32, #tpu.memory_space<vmem>>, vector<4x8xf32>,
    %c0_42 = arith.constant 0 : index
    %c0_43 = arith.constant 0 : index
    %43 = vector.load %arg12[%c0_42, %c0_43] : memref<4x8xf32, #tpu.memory_space<vmem>>, vector<4x8xf32>
    %44 = vector.extract_strided_slice %9 {offsets = [0, 1], sizes = [4, 8], strides = [1, 1]} : vector<4x16xf32> to vector<4x8xf32>
    %c1 = arith.constant 1 : index
    %c0_44 = arith.constant 0 : index
    %45 = vector.load %arg8[%c1, %c0_44] : memref<9x8xf32, #tpu.memory_space<vmem>>, vector<1x8xf32>
    %46 = vector.broadcast %45 : vector<1x8xf32> to vector<4x8xf32>
    %47 = arith.mulf %44, %46 : vector<4x8xf32>
    %48 = arith.addf %43, %47 : vector<4x8xf32>
    %c0_45 = arith.constant 0 : index
    %c0_46 = arith.constant 0 : index
    %49 = vector.load %arg12[%c0_45, %c0_46] : memref<4x8xf32, #tpu.memory_space<vmem>>, vector<4x8xf32>
    tpu.vector_store %arg12[%c0_45, %c0_46], %48 {strides = array<i32>} : memref<4x8xf32, #tpu.memory_space<vmem>>, vector<4x8xf32>,
    %c0_47 = arith.constant 0 : index
    %c0_48 = arith.constant 0 : index
    %50 = vector.load %arg12[%c0_47, %c0_48] : memref<4x8xf32, #tpu.memory_space<vmem>>, vector<4x8xf32>
    %51 = vector.extract_strided_slice %9 {offsets = [0, 2], sizes = [4, 8], strides = [1, 1]} : vector<4x16xf32> to vector<4x8xf32>
    %c2 = arith.constant 2 : index
    %c0_49 = arith.constant 0 : index
    %52 = vector.load %arg8[%c2, %c0_49] : memref<9x8xf32, #tpu.memory_space<vmem>>, vector<1x8xf32>
    %53 = vector.broadcast %52 : vector<1x8xf32> to vector<4x8xf32>
    %54 = arith.mulf %51, %53 : vector<4x8xf32>
    %55 = arith.addf %50, %54 : vector<4x8xf32>
    %c0_50 = arith.constant 0 : index
    %c0_51 = arith.constant 0 : index
    %56 = vector.load %arg12[%c0_50, %c0_51] : memref<4x8xf32, #tpu.memory_space<vmem>>, vector<4x8xf32>
    tpu.vector_store %arg12[%c0_50, %c0_51], %55 {strides = array<i32>} : memref<4x8xf32, #tpu.memory_space<vmem>>, vector<4x8xf32>,
    %c0_52 = arith.constant 0 : index
    %c0_53 = arith.constant 0 : index
    %57 = vector.load %arg12[%c0_52, %c0_53] : memref<4x8xf32, #tpu.memory_space<vmem>>, vector<4x8xf32>
    %58 = vector.extract_strided_slice %9 {offsets = [0, 3], sizes = [4, 8], strides = [1, 1]} : vector<4x16xf32> to vector<4x8xf32>
    %c3 = arith.constant 3 : index
    %c0_54 = arith.constant 0 : index
    %59 = vector.load %arg8[%c3, %c0_54] : memref<9x8xf32, #tpu.memory_space<vmem>>, vector<1x8xf32>
    %60 = vector.broadcast %59 : vector<1x8xf32> to vector<4x8xf32>
    %61 = arith.mulf %58, %60 : vector<4x8xf32>
    %62 = arith.addf %57, %61 : vector<4x8xf32>
    %c0_55 = arith.constant 0 : index
    %c0_56 = arith.constant 0 : index
    %63 = vector.load %arg12[%c0_55, %c0_56] : memref<4x8xf32, #tpu.memory_space<vmem>>, vector<4x8xf32>
    tpu.vector_store %arg12[%c0_55, %c0_56], %62 {strides = array<i32>} : memref<4x8xf32, #tpu.memory_space<vmem>>, vector<4x8xf32>,
    %c0_57 = arith.constant 0 : index
    %c0_58 = arith.constant 0 : index
    %64 = vector.load %arg12[%c0_57, %c0_58] : memref<4x8xf32, #tpu.memory_space<vmem>>, vector<4x8xf32>
    %65 = vector.extract_strided_slice %9 {offsets = [0, 4], sizes = [4, 8], strides = [1, 1]} : vector<4x16xf32> to vector<4x8xf32>
    %c4_59 = arith.constant 4 : index
    %c0_60 = arith.constant 0 : index
    %66 = vector.load %arg8[%c4_59, %c0_60] : memref<9x8xf32, #tpu.memory_space<vmem>>, vector<1x8xf32>
    %67 = vector.broadcast %66 : vector<1x8xf32> to vector<4x8xf32>
    %68 = arith.mulf %65, %67 : vector<4x8xf32>
    %69 = arith.addf %64, %68 : vector<4x8xf32>
    %c0_61 = arith.constant 0 : index
    %c0_62 = arith.constant 0 : index
    %70 = vector.load %arg12[%c0_61, %c0_62] : memref<4x8xf32, #tpu.memory_space<vmem>>, vector<4x8xf32>
    tpu.vector_store %arg12[%c0_61, %c0_62], %69 {strides = array<i32>} : memref<4x8xf32, #tpu.memory_space<vmem>>, vector<4x8xf32>,
    %c0_63 = arith.constant 0 : index
    %c0_64 = arith.constant 0 : index
    %71 = vector.load %arg12[%c0_63, %c0_64] : memref<4x8xf32, #tpu.memory_space<vmem>>, vector<4x8xf32>
    %72 = vector.extract_strided_slice %9 {offsets = [0, 5], sizes = [4, 8], strides = [1, 1]} : vector<4x16xf32> to vector<4x8xf32>
    %c5 = arith.constant 5 : index
    %c0_65 = arith.constant 0 : index
    %73 = vector.load %arg8[%c5, %c0_65] : memref<9x8xf32, #tpu.memory_space<vmem>>, vector<1x8xf32>
    %74 = vector.broadcast %73 : vector<1x8xf32> to vector<4x8xf32>
    %75 = arith.mulf %72, %74 : vector<4x8xf32>
    %76 = arith.addf %71, %75 : vector<4x8xf32>
    %c0_66 = arith.constant 0 : index
    %c0_67 = arith.constant 0 : index
    %77 = vector.load %arg12[%c0_66, %c0_67] : memref<4x8xf32, #tpu.memory_space<vmem>>, vector<4x8xf32>
    tpu.vector_store %arg12[%c0_66, %c0_67], %76 {strides = array<i32>} : memref<4x8xf32, #tpu.memory_space<vmem>>, vector<4x8xf32>,
    %c0_68 = arith.constant 0 : index
    %c0_69 = arith.constant 0 : index
    %78 = vector.load %arg12[%c0_68, %c0_69] : memref<4x8xf32, #tpu.memory_space<vmem>>, vector<4x8xf32>
    %79 = vector.extract_strided_slice %9 {offsets = [0, 6], sizes = [4, 8], strides = [1, 1]} : vector<4x16xf32> to vector<4x8xf32>
    %c6 = arith.constant 6 : index
    %c0_70 = arith.constant 0 : index
    %80 = vector.load %arg8[%c6, %c0_70] : memref<9x8xf32, #tpu.memory_space<vmem>>, vector<1x8xf32>
    %81 = vector.broadcast %80 : vector<1x8xf32> to vector<4x8xf32>
    %82 = arith.mulf %79, %81 : vector<4x8xf32>
    %83 = arith.addf %78, %82 : vector<4x8xf32>
    %c0_71 = arith.constant 0 : index
    %c0_72 = arith.constant 0 : index
    %84 = vector.load %arg12[%c0_71, %c0_72] : memref<4x8xf32, #tpu.memory_space<vmem>>, vector<4x8xf32>
    tpu.vector_store %arg12[%c0_71, %c0_72], %83 {strides = array<i32>} : memref<4x8xf32, #tpu.memory_space<vmem>>, vector<4x8xf32>,
    %c0_73 = arith.constant 0 : index
    %c0_74 = arith.constant 0 : index
    %85 = vector.load %arg12[%c0_73, %c0_74] : memref<4x8xf32, #tpu.memory_space<vmem>>, vector<4x8xf32>
    %86 = vector.extract_strided_slice %9 {offsets = [0, 7], sizes = [4, 8], strides = [1, 1]} : vector<4x16xf32> to vector<4x8xf32>
    %c7 = arith.constant 7 : index
    %c0_75 = arith.constant 0 : index
    %87 = vector.load %arg8[%c7, %c0_75] : memref<9x8xf32, #tpu.memory_space<vmem>>, vector<1x8xf32>
    %88 = vector.broadcast %87 : vector<1x8xf32> to vector<4x8xf32>
    %89 = arith.mulf %86, %88 : vector<4x8xf32>
    %90 = arith.addf %85, %89 : vector<4x8xf32>
    %c0_76 = arith.constant 0 : index
    %c0_77 = arith.constant 0 : index
    %91 = vector.load %arg12[%c0_76, %c0_77] : memref<4x8xf32, #tpu.memory_space<vmem>>, vector<4x8xf32>
    tpu.vector_store %arg12[%c0_76, %c0_77], %90 {strides = array<i32>} : memref<4x8xf32, #tpu.memory_space<vmem>>, vector<4x8xf32>,
    %c0_78 = arith.constant 0 : index
    %c0_79 = arith.constant 0 : index
    %92 = vector.load %arg12[%c0_78, %c0_79] : memref<4x8xf32, #tpu.memory_space<vmem>>, vector<4x8xf32>
    %93 = vector.extract_strided_slice %9 {offsets = [0, 8], sizes = [4, 8], strides = [1, 1]} : vector<4x16xf32> to vector<4x8xf32>
    %c8_80 = arith.constant 8 : index
    %c0_81 = arith.constant 0 : index
    %94 = vector.load %arg8[%c8_80, %c0_81] : memref<9x8xf32, #tpu.memory_space<vmem>>, vector<1x8xf32>
    %95 = vector.broadcast %94 : vector<1x8xf32> to vector<4x8xf32>
    %96 = arith.mulf %93, %95 : vector<4x8xf32>
    %97 = arith.addf %92, %96 : vector<4x8xf32>
    %c0_82 = arith.constant 0 : index
    %c0_83 = arith.constant 0 : index
    %98 = vector.load %arg12[%c0_82, %c0_83] : memref<4x8xf32, #tpu.memory_space<vmem>>, vector<4x8xf32>
    tpu.vector_store %arg12[%c0_82, %c0_83], %97 {strides = array<i32>} : memref<4x8xf32, #tpu.memory_space<vmem>>, vector<4x8xf32>,
    %c0_84 = arith.constant 0 : index
    %c0_85 = arith.constant 0 : index
    %99 = vector.load %arg12[%c0_84, %c0_85] : memref<4x8xf32, #tpu.memory_space<vmem>>, vector<4x8xf32>
    %cst_86 = arith.constant dense<0.000000e+00> : vector<8x8xf32>
    %100 = tpu.matmul %2, %99, %cst_86 {dimension_numbers = #tpu.dot_dimension_numbers<[1], [0], [0], [1], [0, 0, 1, 1], [], []>} : vector<8x4xf32>, vector<4x8xf32>, vector<8x8xf32> -> vector<8x8xf32>
    %101 = vector.broadcast %5 : vector<8x1xf32> to vector<8x8xf32>
    %102 = arith.addf %100, %101 : vector<8x8xf32>
    %103 = arith.addf %102, %33 : vector<8x8xf32>
    %c0_87 = arith.constant 0 : index
    %c0_88 = arith.constant 0 : index
    %104 = vector.load %arg13[%c0_87, %c0_88] : memref<8x128xf32, #tpu.memory_space<vmem>>, vector<8x8xf32>
    tpu.vector_store %arg13[%c0_87, %c0_88], %103 {strides = array<i32>} : memref<8x128xf32, #tpu.memory_space<vmem>>, vector<8x8xf32>,
    %c0_89 = arith.constant 0 : index
    %c0_90 = arith.constant 0 : index
    %105 = vector.load %arg13[%c0_89, %c0_90] : memref<8x128xf32, #tpu.memory_space<vmem>>, vector<8x128xf32>
    %c0_91 = arith.constant 0 : index
    %c0_92 = arith.constant 0 : index
    %c0_93 = arith.constant 0 : index
    %106 = vector.load %arg9[%c0_91, %c0_92, %c0_93] : memref<1x8x128xf32, #tpu.memory_space<vmem>>, vector<1x8x128xf32>
    %107 = vector.shape_cast %106 : vector<1x8x128xf32> to vector<8x128xf32>
    %108 = vector.shape_cast %105 : vector<8x128xf32> to vector<1x8x128xf32>
    tpu.vector_store %arg9[%c0_91, %c0_92, %c0_93], %108 {strides = array<i32>} : memref<1x8x128xf32, #tpu.memory_space<vmem>>, vector<1x8x128xf32>,
    return
  }
  func.func @transform_0(%arg0: i32) -> (i32, i32, i32) {
    %c0_i32 = arith.constant 0 : i32
    %c0_i32_0 = arith.constant 0 : i32
    %c0_i32_1 = arith.constant 0 : i32
    return %arg0, %c0_i32, %c0_i32_0 : i32, i32, i32
  }
  func.func @transform_1(%arg0: i32) -> (i32, i32) {
    %c0_i32 = arith.constant 0 : i32
    %c0_i32_0 = arith.constant 0 : i32
    %c0_i32_1 = arith.constant 0 : i32
    return %c0_i32, %c0_i32_0 : i32, i32
  }
  func.func @transform_2(%arg0: i32) -> (i32, i32) {
    %c0_i32 = arith.constant 0 : i32
    %c0_i32_0 = arith.constant 0 : i32
    %c0_i32_1 = arith.constant 0 : i32
    return %c0_i32, %c0_i32_0 : i32, i32
  }
  func.func @transform_3(%arg0: i32) -> (i32, i32) {
    %c0_i32 = arith.constant 0 : i32
    %c0_i32_0 = arith.constant 0 : i32
    %c0_i32_1 = arith.constant 0 : i32
    return %c0_i32, %c0_i32_0 : i32, i32
  }
  func.func @transform_4(%arg0: i32) -> (i32, i32) {
    %c0_i32 = arith.constant 0 : i32
    %c0_i32_0 = arith.constant 0 : i32
    %c0_i32_1 = arith.constant 0 : i32
    return %c0_i32, %c0_i32_0 : i32, i32
  }
  func.func @transform_5(%arg0: i32) -> (i32, i32) {
    %c0_i32 = arith.constant 0 : i32
    %c0_i32_0 = arith.constant 0 : i32
    %c0_i32_1 = arith.constant 0 : i32
    return %c0_i32, %c0_i32_0 : i32, i32
  }
  func.func @transform_6(%arg0: i32) -> (i32, i32) {
    %c0_i32 = arith.constant 0 : i32
    %c0_i32_0 = arith.constant 0 : i32
    %c0_i32_1 = arith.constant 0 : i32
    return %c0_i32, %c0_i32_0 : i32, i32
  }
  func.func @transform_7(%arg0: i32) -> (i32, i32) {
    %c0_i32 = arith.constant 0 : i32
    %c0_i32_0 = arith.constant 0 : i32
    %c0_i32_1 = arith.constant 0 : i32
    return %c0_i32, %c0_i32_0 : i32, i32
  }
  func.func @transform_8(%arg0: i32) -> (i32, i32, i32) {
    %c0_i32 = arith.constant 0 : i32
    %c0_i32_0 = arith.constant 0 : i32
    %c0_i32_1 = arith.constant 0 : i32
    return %arg0, %c0_i32, %c0_i32_0 : i32, i32, i32
  }
}

</mosaic_0001>

<llo_original>
// kernel: tpu_custom_call.1
$region0: #{tpu_custom_call.1}
  #allocation0 [shape = 'u32[]', space=smem, size = 0x4, offset = 0x4, fixed_abs, tag = 'smem constant byte address 0x4 - core index']
  #allocation1 [shape = 'u32[144,128]{1,0:T(1,128)}', space=vmem, size = 0x12000, scoped, tag = 'internal scratch']
  #allocation2 [shape = 'f32[12,12]{1,0:T(8,128)}', space=vmem, size = 0x2000, scoped, tag = 'scratch operand']
  #allocation3 [shape = 'f32[24,8]{1,0:T(8,128)}', space=vmem, size = 0x3000, scoped, tag = 'scratch operand']
  #allocation4 [shape = 'f32[4,8]{1,0:T(4,128)}', space=vmem, size = 0x800, scoped, tag = 'scratch operand']
  #allocation5 [shape = 'f32[8,128]{1,0:T(8,128)}', space=vmem, size = 0x1000, scoped, tag = 'scratch operand']
  %s0 = inlined_call_operand.vmem [shape: f32[2,4,16], index: 0, kind: input, shape index: {}]
  %s1 = inlined_call_operand.vmem [shape: f32[8,12], index: 1, kind: input, shape index: {}]
  %s2 = inlined_call_operand.vmem [shape: f32[8,1], index: 2, kind: input, shape index: {}]
  %s3 = inlined_call_operand.vmem [shape: f32[8,24], index: 3, kind: input, shape index: {}]
  %s4 = inlined_call_operand.vmem [shape: f32[8,1], index: 4, kind: input, shape index: {}]
  %s5 = inlined_call_operand.vmem [shape: f32[8,4], index: 5, kind: input, shape index: {}]
  %s6 = inlined_call_operand.vmem [shape: f32[8,1], index: 6, kind: input, shape index: {}]
  %s7 = inlined_call_operand.vmem [shape: f32[9,8], index: 7, kind: input, shape index: {}]
  %s8 = inlined_call_operand.hbm [shape: f32[2,8,128], index: 8, kind: output, shape index: {}]
  %s9 = sld [smem:[#allocation0]]
  $region65: #{tpu_custom_call.1} parent=0
    _
  %s11 = ssub.s32 1, %s9
  %s12 = scalar_select 0, %s11, %s9
  $region1: #{tpu_custom_call.1} parent=0
    #allocation6 [shape = 'u8[8192]{0}', space=vmem, size = 0x2000, scoped, tag = 'output window, operand 0']
    #allocation7 [shape = 's32[2]{0}', space=sflag, size = 0x8, scoped, tag = 'scoped memory for tpu_custom_call.1']
    %13 = vsyncpa [#allocation7], 0
    %s14 = scalar_lea.sflag [#allocation7], 1
    %15 = vsyncpa %s14, 0
    loop: start=0, step=1, limit=4
    $region2: #{tpu_custom_call.1} parent=1 // loop_pre_header
      _
    $region3: #{tpu_custom_call.1} parent=1 // loop_header
      %s17 = sphi 0, %s21
      %p18 = scmp.ge.s32.totalorder %s17, 4
      %s27 = sphi 0, %s29
      %s30 = sphi 0, %s27
      %s31 = sphi 0, %s30
      %s47 = sphi 0, %s31
      %s51 = sphi 0, %s51
      %s53 = sphi 0, %s51
      %s54 = sphi 0, %s53
      %s68 = sphi 0, %s54
      %s72 = sphi 0, %s72
      %s74 = sphi 0, %s72
      %s75 = sphi 0, %s74
      %s89 = sphi 0, %s75
      %s93 = sphi 0, %s93
      %s95 = sphi 0, %s93
      %s96 = sphi 0, %s95
      %s110 = sphi 0, %s96
      %s114 = sphi 0, %s114
      %s116 = sphi 0, %s114
      %s117 = sphi 0, %s116
      %s131 = sphi 0, %s117
      %s135 = sphi 0, %s135
      %s137 = sphi 0, %s135
      %s138 = sphi 0, %s137
      %s152 = sphi 0, %s138
      %s156 = sphi 0, %s156
      %s158 = sphi 0, %s156
      %s159 = sphi 0, %s158
      %s173 = sphi 0, %s159
      %s177 = sphi 0, %s177
      %s179 = sphi 0, %s177
      %s180 = sphi 0, %s179
      %s194 = sphi 0, %s180
      %s200 = sphi 0, %s202
      %s203 = sphi 0, %s200
      %s204 = sphi 0, %s203
      %s220 = sphi 0, %s204
    $region4: #{tpu_custom_call.1} parent=1 // loop_header_branch
      %20 = sbr.rel (%p18) target = $region8
    $region5: #{tpu_custom_call.1} parent=1 // loop_body
      %s22 = ssub.s32 %s17, 1
      %s23 = ssub.s32 %s17, 2
      %s24 = sadd.s32 %s17, 1
      %s25 = ssub.s32 %s17, %s24
      %p26 = scmp.eq.s32.totalorder %s25, 0
      %s28 = sadd.s32 %s27, 1
      %s29 = scalar_select %p26, %s27, %s28
      %p32 = pneg %p26
      %p33 = scmp.eq.s32.totalorder %s17, 1
      %p34 = por %p32, %p33
      %p35 = scmp.ne.s32.totalorder %s27, %s30
      %p36 = scmp.eq.s32.totalorder %s17, 0
      %p37 = por %p35, %p36
      %p38 = scmp.ne.s32.totalorder %s27, %s30
      %p39 = scmp.eq.s32.totalorder %s22, 1
      %p40 = por %p38, %p39
      %p41 = scmp.ne.s32.totalorder %s30, %s31
      %p42 = scmp.eq.s32.totalorder %s22, 0
      %p43 = por %p41, %p42
      %p44 = scmp.ne.s32.totalorder %s30, %s31
      %p45 = scmp.eq.s32.totalorder %s23, 1
      %p46 = por %p44, %p45
      %p48 = scmp.ne.s32.totalorder %s31, %s47
      %p49 = scmp.eq.s32.totalorder %s23, 0
      %p50 = por %p48, %p49
      %s52 = sadd.s32 %s51, 1
      %p55 = scmp.eq.s32.totalorder %s17, 1
      %p56 = scmp.ne.s32.totalorder %s51, %s53
      %p57 = scmp.eq.s32.totalorder %s17, 0
      %p58 = por %p56, %p57
      %p59 = scmp.ne.s32.totalorder %s51, %s53
      %p60 = scmp.eq.s32.totalorder %s22, 1
      %p61 = por %p59, %p60
      %p62 = scmp.ne.s32.totalorder %s53, %s54
      %p63 = scmp.eq.s32.totalorder %s22, 0
      %p64 = por %p62, %p63
      %p65 = scmp.ne.s32.totalorder %s53, %s54
      %p66 = scmp.eq.s32.totalorder %s23, 1
      %p67 = por %p65, %p66
      %p69 = scmp.ne.s32.totalorder %s54, %s68
      %p70 = scmp.eq.s32.totalorder %s23, 0
      %p71 = por %p69, %p70
      %s73 = sadd.s32 %s72, 1
      %p76 = scmp.eq.s32.totalorder %s17, 1
      %p77 = scmp.ne.s32.totalorder %s72, %s74
      %p78 = scmp.eq.s32.totalorder %s17, 0
      %p79 = por %p77, %p78
      %p80 = scmp.ne.s32.totalorder %s72, %s74
      %p81 = scmp.eq.s32.totalorder %s22, 1
      %p82 = por %p80, %p81
      %p83 = scmp.ne.s32.totalorder %s74, %s75
      %p84 = scmp.eq.s32.totalorder %s22, 0
      %p85 = por %p83, %p84
      %p86 = scmp.ne.s32.totalorder %s74, %s75
      %p87 = scmp.eq.s32.totalorder %s23, 1
      %p88 = por %p86, %p87
      %p90 = scmp.ne.s32.totalorder %s75, %s89
      %p91 = scmp.eq.s32.totalorder %s23, 0
      %p92 = por %p90, %p91
      %s94 = sadd.s32 %s93, 1
      %p97 = scmp.eq.s32.totalorder %s17, 1
      %p98 = scmp.ne.s32.totalorder %s93, %s95
      %p99 = scmp.eq.s32.totalorder %s17, 0
      %p100 = por %p98, %p99
      %p101 = scmp.ne.s32.totalorder %s93, %s95
      %p102 = scmp.eq.s32.totalorder %s22, 1
      %p103 = por %p101, %p102
      %p104 = scmp.ne.s32.totalorder %s95, %s96
      %p105 = scmp.eq.s32.totalorder %s22, 0
      %p106 = por %p104, %p105
      %p107 = scmp.ne.s32.totalorder %s95, %s96
      %p108 = scmp.eq.s32.totalorder %s23, 1
      %p109 = por %p107, %p108
      %p111 = scmp.ne.s32.totalorder %s96, %s110
      %p112 = scmp.eq.s32.totalorder %s23, 0
      %p113 = por %p111, %p112
      %s115 = sadd.s32 %s114, 1
      %p118 = scmp.eq.s32.totalorder %s17, 1
      %p119 = scmp.ne.s32.totalorder %s114, %s116
      %p120 = scmp.eq.s32.totalorder %s17, 0
      %p121 = por %p119, %p120
      %p122 = scmp.ne.s32.totalorder %s114, %s116
      %p123 = scmp.eq.s32.totalorder %s22, 1
      %p124 = por %p122, %p123
      %p125 = scmp.ne.s32.totalorder %s116, %s117
      %p126 = scmp.eq.s32.totalorder %s22, 0
      %p127 = por %p125, %p126
      %p128 = scmp.ne.s32.totalorder %s116, %s117
      %p129 = scmp.eq.s32.totalorder %s23, 1
      %p130 = por %p128, %p129
      %p132 = scmp.ne.s32.totalorder %s117, %s131
      %p133 = scmp.eq.s32.totalorder %s23, 0
      %p134 = por %p132, %p133
      %s136 = sadd.s32 %s135, 1
      %p139 = scmp.eq.s32.totalorder %s17, 1
      %p140 = scmp.ne.s32.totalorder %s135, %s137
      %p141 = scmp.eq.s32.totalorder %s17, 0
      %p142 = por %p140, %p141
      %p143 = scmp.ne.s32.totalorder %s135, %s137
      %p144 = scmp.eq.s32.totalorder %s22, 1
      %p145 = por %p143, %p144
      %p146 = scmp.ne.s32.totalorder %s137, %s138
      %p147 = scmp.eq.s32.totalorder %s22, 0
      %p148 = por %p146, %p147
      %p149 = scmp.ne.s32.totalorder %s137, %s138
      %p150 = scmp.eq.s32.totalorder %s23, 1
      %p151 = por %p149, %p150
      %p153 = scmp.ne.s32.totalorder %s138, %s152
      %p154 = scmp.eq.s32.totalorder %s23, 0
      %p155 = por %p153, %p154
      %s157 = sadd.s32 %s156, 1
      %p160 = scmp.eq.s32.totalorder %s17, 1
      %p161 = scmp.ne.s32.totalorder %s156, %s158
      %p162 = scmp.eq.s32.totalorder %s17, 0
      %p163 = por %p161, %p162
      %p164 = scmp.ne.s32.totalorder %s156, %s158
      %p165 = scmp.eq.s32.totalorder %s22, 1
      %p166 = por %p164, %p165
      %p167 = scmp.ne.s32.totalorder %s158, %s159
      %p168 = scmp.eq.s32.totalorder %s22, 0
      %p169 = por %p167, %p168
      %p170 = scmp.ne.s32.totalorder %s158, %s159
      %p171 = scmp.eq.s32.totalorder %s23, 1
      %p172 = por %p170, %p171
      %p174 = scmp.ne.s32.totalorder %s159, %s173
      %p175 = scmp.eq.s32.totalorder %s23, 0
      %p176 = por %p174, %p175
      %s178 = sadd.s32 %s177, 1
      %p181 = scmp.eq.s32.totalorder %s17, 1
      %p182 = scmp.ne.s32.totalorder %s177, %s179
      %p183 = scmp.eq.s32.totalorder %s17, 0
      %p184 = por %p182, %p183
      %p185 = scmp.ne.s32.totalorder %s177, %s179
      %p186 = scmp.eq.s32.totalorder %s22, 1
      %p187 = por %p185, %p186
      %p188 = scmp.ne.s32.totalorder %s179, %s180
      %p189 = scmp.eq.s32.totalorder %s22, 0
      %p190 = por %p188, %p189
      %p191 = scmp.ne.s32.totalorder %s179, %s180
      %p192 = scmp.eq.s32.totalorder %s23, 1
      %p193 = por %p191, %p192
      %p195 = scmp.ne.s32.totalorder %s180, %s194
      %p196 = scmp.eq.s32.totalorder %s23, 0
      %p197 = por %p195, %p196
      %s198 = ssub.s32 %s17, %s24
      %p199 = scmp.eq.s32.totalorder %s198, 0
      %s201 = sadd.s32 %s200, 1
      %s202 = scalar_select %p199, %s200, %s201
      %p205 = pneg %p199
      %p206 = scmp.eq.s32.totalorder %s17, 1
      %p207 = por %p205, %p206
      %p208 = scmp.ne.s32.totalorder %s200, %s203
      %p209 = scmp.eq.s32.totalorder %s17, 0
      %p210 = por %p208, %p209
      %p211 = scmp.ne.s32.totalorder %s200, %s203
      %p212 = scmp.eq.s32.totalorder %s22, 1
      %p213 = por %p211, %p212
      %p214 = scmp.ne.s32.totalorder %s203, %s204
      %p215 = scmp.eq.s32.totalorder %s22, 0
      %p216 = por %p214, %p215
      %p217 = scmp.ne.s32.totalorder %s203, %s204
      %p218 = scmp.eq.s32.totalorder %s23, 1
      %p219 = por %p217, %p218
      %p221 = scmp.ne.s32.totalorder %s204, %s220
      %p222 = scmp.eq.s32.totalorder %s23, 0
      %p223 = por %p221, %p222
      %p224 = scmp.le.s32.totalorder 1, %s17
      %p225 = scmp.lt.s32.totalorder %s17, 3
      %p226 = pnand %p224, %p225
      %p227 = pneg %p226
      // Predicated region
      $region9: #{tpu_custom_call.1} parent=5 // pred_check
        _
      $region10: #{tpu_custom_call.1} parent=5 // pred_check_branch
        %229 = sbr.rel (%p226) target = $region12
      $region11: #{tpu_custom_call.1} parent=5 // pred_region
        %s230 = ssub.s32 %s17, 1
        // Predicated region
        $region13: #{tpu_custom_call.1} parent=11 // pred_check
          %p231 = pneg %p64
        $region14: #{tpu_custom_call.1} parent=11 // pred_check_branch
          %233 = sbr.rel (%p231) target = $region16
        $region15: #{tpu_custom_call.1} parent=11 // pred_region
          _
        $region16: #{tpu_custom_call.1} parent=11 // pred_fallthru
          _
        // Predicated region
        $region17: #{tpu_custom_call.1} parent=11 // pred_check
          %p234 = pneg %p85
        $region18: #{tpu_custom_call.1} parent=11 // pred_check_branch
          %236 = sbr.rel (%p234) target = $region20
        $region19: #{tpu_custom_call.1} parent=11 // pred_region
          _
        $region20: #{tpu_custom_call.1} parent=11 // pred_fallthru
          _
        // Predicated region
        $region21: #{tpu_custom_call.1} parent=11 // pred_check
          %p237 = pneg %p106
        $region22: #{tpu_custom_call.1} parent=11 // pred_check_branch
          %239 = sbr.rel (%p237) target = $region24
        $region23: #{tpu_custom_call.1} parent=11 // pred_region
          _
        $region24: #{tpu_custom_call.1} parent=11 // pred_fallthru
          _
        // Predicated region
        $region25: #{tpu_custom_call.1} parent=11 // pred_check
          %p240 = pneg %p127
        $region26: #{tpu_custom_call.1} parent=11 // pred_check_branch
          %242 = sbr.rel (%p240) target = $region28
        $region27: #{tpu_custom_call.1} parent=11 // pred_region
          _
        $region28: #{tpu_custom_call.1} parent=11 // pred_fallthru
          _
        // Predicated region
        $region29: #{tpu_custom_call.1} parent=11 // pred_check
          %p243 = pneg %p148
        $region30: #{tpu_custom_call.1} parent=11 // pred_check_branch
          %245 = sbr.rel (%p243) target = $region32
        $region31: #{tpu_custom_call.1} parent=11 // pred_region
          _
        $region32: #{tpu_custom_call.1} parent=11 // pred_fallthru
          _
        // Predicated region
        $region33: #{tpu_custom_call.1} parent=11 // pred_check
          %p246 = pneg %p169
        $region34: #{tpu_custom_call.1} parent=11 // pred_check_branch
          %248 = sbr.rel (%p246) target = $region36
        $region35: #{tpu_custom_call.1} parent=11 // pred_region
          _
        $region36: #{tpu_custom_call.1} parent=11 // pred_fallthru
          _
        // Predicated region
        $region37: #{tpu_custom_call.1} parent=11 // pred_check
          %p249 = pneg %p190
        $region38: #{tpu_custom_call.1} parent=11 // pred_check_branch
          %251 = sbr.rel (%p249) target = $region40
        $region39: #{tpu_custom_call.1} parent=11 // pred_region
          _
        $region40: #{tpu_custom_call.1} parent=11 // pred_fallthru
          _
      $region12: #{tpu_custom_call.1} parent=5 // pred_fallthru
        _
      %p252 = scmp.lt.s32.totalorder %s17, 2
      // Predicated region
      $region41: #{tpu_custom_call.1} parent=5 // pred_check
        %p253 = pneg %p252
      $region42: #{tpu_custom_call.1} parent=5 // pred_check_branch
        %255 = sbr.rel (%p253) target = $region44
      $region43: #{tpu_custom_call.1} parent=5 // pred_region
        // Predicated region
        $region45: #{tpu_custom_call.1} parent=43 // pred_check
          %p256 = pneg %p37
        $region46: #{tpu_custom_call.1} parent=43 // pred_check_branch
          %258 = sbr.rel (%p256) target = $region48
        $region47: #{tpu_custom_call.1} parent=43 // pred_region
          %p259 = scmp.lt.s32.totalorder %s17, 1
          %s260 = scalar_select %p259, %s17, 1
          %s261 = smul.addr %s260, 4
          %s262 = scalar_lea.vmem %s0, %s261
        $region48: #{tpu_custom_call.1} parent=43 // pred_fallthru
          _
      $region44: #{tpu_custom_call.1} parent=5 // pred_fallthru
        _
      %p263 = scmp.le.s32.totalorder 1, %s17
      %p264 = scmp.lt.s32.totalorder %s17, 3
      %p265 = pnand %p263, %p264
      %p266 = pneg %p265
      // Predicated region
      $region49: #{tpu_custom_call.1} parent=5 // pred_check
        _
      $region50: #{tpu_custom_call.1} parent=5 // pred_check_branch
        %268 = sbr.rel (%p265) target = $region52
      $region51: #{tpu_custom_call.1} parent=5 // pred_region
        %s269 = ssub.s32 %s17, 1
        %p270 = scmp.lt.s32.totalorder %s22, 1
        %s271 = scalar_select %p270, %s22, 1
        %s272 = smul.addr %s271, 4
        %s273 = scalar_lea.vmem %s0, %s272
        %p274 = pneg %p43
        %p275 = pneg %p40
        %p276 = pneg %p64
        %p277 = pneg %p61
        %p278 = pneg %p85
        %p279 = pneg %p82
        %p280 = pneg %p106
        %p281 = pneg %p103
        %p282 = pneg %p127
        %p283 = pneg %p124
        %p284 = pneg %p148
        %p285 = pneg %p145
        %p286 = pneg %p169
        %p287 = pneg %p166
        %p288 = pneg %p190
        %p289 = pneg %p187
        %p290 = pneg %p216
        %p291 = pneg %p213
        %s292 = sand.u32 %s203, 1
        %s293 = scalar_lea.sflag [#allocation7], %s292
        %s294 = sand.u32 %s203, 1
        %s295 = smul.addr %s294, 8
        %s296 = scalar_lea.vmem [#allocation6], %s295
        %p297 = scmp.lt.s32.totalorder %s22, 1
        %s298 = scalar_select %p297, %s22, 1
        %s299 = smul.addr %s298, 4
        %s300 = scalar_lea.vmem %s0, %s299
        %v301 = vld [vmem:[%s1] sm:$0xff]
        %v302 = vld [vmem:[%s3] sm:$0xff]
        %v303 = vld [vmem:[%s5] sm:$0xff]
        %v304 = vld [vmem:[%s2] sm:$0xff]
        %v305 = vld [vmem:[%s4] sm:$0xff]
        %v306 = vld [vmem:[%s6] sm:$0xff]
        %307 = vst [vmem:[#allocation5] sm:$0xff] 0.0
        %v308 = vld [vmem:[%s300] sm:$0xf]
        %vm309 = vcmask 93184
        %310 = vst.msk [vmem:[#allocation2] sm:$0xf] %vm309, %v308
        %312 = vrot.lane.b32.xlu0 %v308, 126
        %v313 = vpop.permute.xlu0 %312
        %315 = vst.msk [vmem:[#allocation2 + $0x4] sm:$0xf] %vm309, %v313
        %316 = vrot.lane.b32.xlu0 %v308, 124
        %v317 = vpop.permute.xlu0 %316
        %319 = vst.msk [vmem:[#allocation2 + $0x8] sm:$0xf] %vm309, %v317
        %v320 = vld [vmem:[#allocation2] sm:$0xff]
        %v321 = vld [vmem:[#allocation2 + $0x8] sm:$0xf]
        %323 = vset.pattern.permute.xlu0 0
        %324 = vperm.xlu0 %323, %v304
        %v325 = vpop.permute.xlu0 %324
        %vm327 = vcmask 97280
        %v329 = vsel %vm327, %v301, 0
        %vm331 = vcmask 1043456
        %v333 = vsel %vm331, %v321, 0
        %335 = vmatprep.subr.mxu0 0.0
        %336 = vmatpush1.msra.mxu0 %v320
        %337 = vmatprep.subr.mxu0 0.0
        %338 = vmatpush1.msra.mxu0 %v333
        %339 = vmatprep.subr.mxu0 0.0
        %340 = vmatpush1.msra.mxu0 0.0
        %341 = vmatprep.subr.mxu0 0.0
        %342 = vmatpush1.msra.mxu0 0.0
        %343 = vmatprep.subr.mxu0 0.0
        %344 = vmatpush1.msra.mxu0 0.0
        %345 = vmatprep.subr.mxu0 0.0
        %346 = vmatpush1.msra.mxu0 0.0
        %347 = vmatprep.subr.mxu0 0.0
        %348 = vmatpush1.msra.mxu0 0.0
        %349 = vmatprep.subr.mxu0 0.0
        %350 = vmatpush1.msra.mxu0 0.0
        %351 = vmatprep.subr.mxu0 0.0
        %352 = vmatpush1.msra.mxu0 0.0
        %353 = vmatprep.subr.mxu0 0.0
        %354 = vmatpush1.msra.mxu0 0.0
        %355 = vmatprep.subr.mxu0 0.0
        %356 = vmatpush1.msra.mxu0 0.0
        %357 = vmatprep.subr.mxu0 0.0
        %358 = vmatpush1.msra.mxu0 0.0
        %359 = vmatprep.subr.mxu0 0.0
        %360 = vmatpush1.msra.mxu0 0.0
        %361 = vmatprep.subr.mxu0 0.0
        %362 = vmatpush1.msra.mxu0 0.0
        %363 = vmatprep.subr.mxu0 0.0
        %364 = vmatpush1.msra.mxu0 0.0
        %365 = vmatprep.subr.mxu0 0.0
        %366 = vmatpush1.msra.mxu0 0.0
        %367 = vmatprep.subr.mxu0 0.0
        %368 = vmatpush1.msra.mxu0 0.0
        %369 = vmatprep.subr.mxu0 0.0
        %370 = vmatpush1.msra.mxu0 0.0
        %371 = vmatprep.subr.mxu0 0.0
        %372 = vmatpush1.msra.mxu0 0.0
        %373 = vmatprep.subr.mxu0 0.0
        %374 = vmatpush1.msra.mxu0 0.0
        %375 = vmatprep.subr.mxu0 0.0
        %376 = vmatpush1.msra.mxu0 0.0
        %377 = vmatprep.subr.mxu0 0.0
        %378 = vmatpush1.msra.mxu0 0.0
        %379 = vmatprep.subr.mxu0 0.0
        %380 = vmatpush1.msra.mxu0 0.0
        %381 = vmatprep.subr.mxu0 0.0
        %382 = vmatpush1.msra.mxu0 0.0
        %383 = vmatprep.subr.mxu0 0.0
        %384 = vmatpush1.msra.mxu0 0.0
        %385 = vmatprep.subr.mxu0 0.0
        %386 = vmatpush1.msra.mxu0 0.0
        %387 = vmatprep.subr.mxu0 0.0
        %388 = vmatpush1.msra.mxu0 0.0
        %389 = vmatprep.subr.mxu0 0.0
        %390 = vmatpush1.msra.mxu0 0.0
        %391 = vmatprep.subr.mxu0 0.0
        %392 = vmatpush1.msra.mxu0 0.0
        %393 = vmatprep.subr.mxu0 0.0
        %394 = vmatpush1.msra.mxu0 0.0
        %395 = vmatprep.subr.mxu0 0.0
        %396 = vmatpush1.msra.mxu0 0.0
        %397 = vmatprep.subr.mxu0 0.0
        %398 = vmatpush1.msra.mxu0 0.0
        %399 = vmatprep.mubr.f32.mxu0 0.0
        %400 = vmatmul.mubr.f32.gmra.mrb[0].mxu0 %v329
        %v401 = vpop.f32.mrb[0].mxu0
        %v402 = vadd.f32 %v325, %v401
        %v403 = vpop.f32.mrb[0].mxu0
        %404 = vdwg.mxu0
        %v405 = vmax.f32 %v402, 0.0
        %vm406 = vcmask 64512
        %407 = vst.msk [vmem:[#allocation3] sm:$0xff] %vm406, %v405
        %409 = vrot.lane.b32.xlu0 %v405, 126
        %v410 = vpop.permute.xlu0 %409
        %412 = vst.msk [vmem:[#allocation3 + $0x8] sm:$0xff] %vm406, %v410
        %413 = vrot.lane.b32.xlu0 %v405, 124
        %v414 = vpop.permute.xlu0 %413
        %416 = vst.msk [vmem:[#allocation3 + $0x10] sm:$0xff] %vm406, %v414
        %v417 = vld [vmem:[#allocation3] sm:$0xff]
        %v418 = vld [vmem:[#allocation3 + $0x8] sm:$0xff]
        %v419 = vld [vmem:[#allocation3 + $0x10] sm:$0xff]
        %421 = vset.pattern.permute.xlu0 0
        %422 = vperm.xlu0 %421, %v305
        %v423 = vpop.permute.xlu0 %422
        %vm425 = vcmask 195584
        %v427 = vsel %vm425, %v302, 0
        %429 = vmatprep.subr.mxu0 0.0
        %430 = vmatpush1.msra.mxu0 %v417
        %431 = vmatprep.subr.mxu0 0.0
        %432 = vmatpush1.msra.mxu0 %v418
        %433 = vmatprep.subr.mxu0 0.0
        %434 = vmatpush1.msra.mxu0 %v419
        %435 = vmatprep.subr.mxu0 0.0
        %436 = vmatpush1.msra.mxu0 0.0
        %437 = vmatprep.subr.mxu0 0.0
        %438 = vmatpush1.msra.mxu0 0.0
        %439 = vmatprep.subr.mxu0 0.0
        %440 = vmatpush1.msra.mxu0 0.0
        %441 = vmatprep.subr.mxu0 0.0
        %442 = vmatpush1.msra.mxu0 0.0
        %443 = vmatprep.subr.mxu0 0.0
        %444 = vmatpush1.msra.mxu0 0.0
        %445 = vmatprep.subr.mxu0 0.0
        %446 = vmatpush1.msra.mxu0 0.0
        %447 = vmatprep.subr.mxu0 0.0
        %448 = vmatpush1.msra.mxu0 0.0
        %449 = vmatprep.subr.mxu0 0.0
        %450 = vmatpush1.msra.mxu0 0.0
        %451 = vmatprep.subr.mxu0 0.0
        %452 = vmatpush1.msra.mxu0 0.0
        %453 = vmatprep.subr.mxu0 0.0
        %454 = vmatpush1.msra.mxu0 0.0
        %455 = vmatprep.subr.mxu0 0.0
        %456 = vmatpush1.msra.mxu0 0.0
        %457 = vmatprep.subr.mxu0 0.0
        %458 = vmatpush1.msra.mxu0 0.0
        %459 = vmatprep.subr.mxu0 0.0
        %460 = vmatpush1.msra.mxu0 0.0
        %461 = vmatprep.subr.mxu0 0.0
        %462 = vmatpush1.msra.mxu0 0.0
        %463 = vmatprep.subr.mxu0 0.0
        %464 = vmatpush1.msra.mxu0 0.0
        %465 = vmatprep.subr.mxu0 0.0
        %466 = vmatpush1.msra.mxu0 0.0
        %467 = vmatprep.subr.mxu0 0.0
        %468 = vmatpush1.msra.mxu0 0.0
        %469 = vmatprep.subr.mxu0 0.0
        %470 = vmatpush1.msra.mxu0 0.0
        %471 = vmatprep.subr.mxu0 0.0
        %472 = vmatpush1.msra.mxu0 0.0
        %473 = vmatprep.subr.mxu0 0.0
        %474 = vmatpush1.msra.mxu0 0.0
        %475 = vmatprep.subr.mxu0 0.0
        %476 = vmatpush1.msra.mxu0 0.0
        %477 = vmatprep.subr.mxu0 0.0
        %478 = vmatpush1.msra.mxu0 0.0
        %479 = vmatprep.subr.mxu0 0.0
        %480 = vmatpush1.msra.mxu0 0.0
        %481 = vmatprep.subr.mxu0 0.0
        %482 = vmatpush1.msra.mxu0 0.0
        %483 = vmatprep.subr.mxu0 0.0
        %484 = vmatpush1.msra.mxu0 0.0
        %485 = vmatprep.subr.mxu0 0.0
        %486 = vmatpush1.msra.mxu0 0.0
        %487 = vmatprep.subr.mxu0 0.0
        %488 = vmatpush1.msra.mxu0 0.0
        %489 = vmatprep.subr.mxu0 0.0
        %490 = vmatpush1.msra.mxu0 0.0
        %491 = vmatprep.subr.mxu0 0.0
        %492 = vmatpush1.msra.mxu0 0.0
        %493 = vmatprep.mubr.f32.mxu0 0.0
        %494 = vmatmul.mubr.f32.gmra.mrb[0].mxu0 %v427
        %v495 = vpop.f32.mrb[0].mxu0
        %v496 = vadd.f32 %v423, %v495
        %v497 = vpop.f32.mrb[0].mxu0
        %498 = vdwg.mxu0
        %v499 = vmax.f32 %v496, 0.0
        %vm500 = vcmask 60416
        %501 = vst.msk [vmem:[#allocation4] sm:$0xf] %vm500, 0.0
        %v502 = vld [vmem:[#allocation4] sm:$0xf]
        %v503 = vld [vmem:[%s7] sm:$0x1]
        %v504 = vlaneseq
        %v505 = vshrl.u32 %v504, 7
        %v506 = vsub.s32 0, %v505
        %v507 = vrot.slane %v503, %v506
        %v508 = vmul.f32 %v308, %v507
        %v509 = vadd.f32 %v502, %v508
        %510 = vst.msk [vmem:[#allocation4] sm:$0xf] %vm500, %v509
        %v511 = vld [vmem:[#allocation4] sm:$0xf]
        %v512 = vld [vmem:[%s7 + $0x1] sm:$0x1]
        %v513 = vlaneseq
        %v514 = vshrl.u32 %v513, 7
        %v515 = vsub.s32 0, %v514
        %v516 = vrot.slane %v512, %v515
        %518 = vrot.lane.b32.xlu0 %v516, 1
        %v519 = vpop.permute.xlu0 %518
        %v521 = vmul.f32 %v308, %v519
        %523 = vrot.lane.b32.xlu0 %v521, 127
        %v524 = vpop.permute.xlu0 %523
        %v526 = vadd.f32 %v511, %v524
        %527 = vst.msk [vmem:[#allocation4] sm:$0xf] %vm500, %v526
        %v528 = vld [vmem:[#allocation4] sm:$0xf]
        %v529 = vld [vmem:[%s7 + $0x2] sm:$0x1]
        %v530 = vlaneseq
        %v531 = vshrl.u32 %v530, 7
        %v532 = vsub.s32 0, %v531
        %v533 = vrot.slane %v529, %v532
        %535 = vrot.lane.b32.xlu0 %v533, 2
        %v536 = vpop.permute.xlu0 %535
        %v538 = vmul.f32 %v308, %v536
        %540 = vrot.lane.b32.xlu0 %v538, 126
        %v541 = vpop.permute.xlu0 %540
        %v543 = vadd.f32 %v528, %v541
        %544 = vst.msk [vmem:[#allocation4] sm:$0xf] %vm500, %v543
        %v545 = vld [vmem:[#allocation4] sm:$0xf]
        %v546 = vld [vmem:[%s7 + $0x3] sm:$0x1]
        %v547 = vlaneseq
        %v548 = vshrl.u32 %v547, 7
        %v549 = vsub.s32 0, %v548
        %v550 = vrot.slane %v546, %v549
        %552 = vrot.lane.b32.xlu0 %v550, 3
        %v553 = vpop.permute.xlu0 %552
        %v555 = vmul.f32 %v308, %v553
        %557 = vrot.lane.b32.xlu0 %v555, 125
        %v558 = vpop.permute.xlu0 %557
        %v560 = vadd.f32 %v545, %v558
        %561 = vst.msk [vmem:[#allocation4] sm:$0xf] %vm500, %v560
        %v562 = vld [vmem:[#allocation4] sm:$0xf]
        %v563 = vld [vmem:[%s7 + $0x4] sm:$0x1]
        %v564 = vlaneseq
        %v565 = vshrl.u32 %v564, 7
        %v566 = vsub.s32 0, %v565
        %v567 = vrot.slane %v563, %v566
        %569 = vrot.lane.b32.xlu0 %v567, 4
        %v570 = vpop.permute.xlu0 %569
        %v572 = vmul.f32 %v308, %v570
        %574 = vrot.lane.b32.xlu0 %v572, 124
        %v575 = vpop.permute.xlu0 %574
        %v577 = vadd.f32 %v562, %v575
        %578 = vst.msk [vmem:[#allocation4] sm:$0xf] %vm500, %v577
        %v579 = vld [vmem:[#allocation4] sm:$0xf]
        %v580 = vld [vmem:[%s7 + $0x5] sm:$0x1]
        %v581 = vlaneseq
        %v582 = vshrl.u32 %v581, 7
        %v583 = vsub.s32 0, %v582
        %v584 = vrot.slane %v580, %v583
        %586 = vrot.lane.b32.xlu0 %v584, 5
        %v587 = vpop.permute.xlu0 %586
        %v589 = vmul.f32 %v308, %v587
        %591 = vrot.lane.b32.xlu0 %v589, 123
        %v592 = vpop.permute.xlu0 %591
        %v594 = vadd.f32 %v579, %v592
        %595 = vst.msk [vmem:[#allocation4] sm:$0xf] %vm500, %v594
        %v596 = vld [vmem:[#allocation4] sm:$0xf]
        %v597 = vld [vmem:[%s7 + $0x6] sm:$0x1]
        %v598 = vlaneseq
        %v599 = vshrl.u32 %v598, 7
        %v600 = vsub.s32 0, %v599
        %v601 = vrot.slane %v597, %v600
        %603 = vrot.lane.b32.xlu0 %v601, 6
        %v604 = vpop.permute.xlu0 %603
        %v606 = vmul.f32 %v308, %v604
        %608 = vrot.lane.b32.xlu0 %v606, 122
        %v609 = vpop.permute.xlu0 %608
        %v611 = vadd.f32 %v596, %v609
        %612 = vst.msk [vmem:[#allocation4] sm:$0xf] %vm500, %v611
        %v613 = vld [vmem:[#allocation4] sm:$0xf]
        %v614 = vld [vmem:[%s7 + $0x7] sm:$0x1]
        %v615 = vlaneseq
        %v616 = vshrl.u32 %v615, 7
        %v617 = vsub.s32 0, %v616
        %v618 = vrot.slane %v614, %v617
        %620 = vrot.lane.b32.xlu0 %v618, 7
        %v621 = vpop.permute.xlu0 %620
        %v623 = vmul.f32 %v308, %v621
        %625 = vrot.lane.b32.xlu0 %v623, 121
        %v626 = vpop.permute.xlu0 %625
        %v628 = vadd.f32 %v613, %v626
        %629 = vst.msk [vmem:[#allocation4] sm:$0xf] %vm500, %v628
        %v630 = vld [vmem:[#allocation4] sm:$0xf]
        %v631 = vld [vmem:[%s7 + $0x8] sm:$0x1]
        %v632 = vlaneseq
        %v633 = vshrl.u32 %v632, 7
        %v634 = vsub.s32 0, %v633
        %v635 = vrot.slane %v631, %v634
        %637 = vrot.lane.b32.xlu0 %v635, 8
        %v638 = vpop.permute.xlu0 %637
        %v640 = vmul.f32 %v308, %v638
        %642 = vrot.lane.b32.xlu0 %v640, 120
        %v643 = vpop.permute.xlu0 %642
        %v645 = vadd.f32 %v630, %v643
        %646 = vst.msk [vmem:[#allocation4] sm:$0xf] %vm500, %v645
        %v647 = vld [vmem:[#allocation4] sm:$0xf]
        %649 = vset.pattern.permute.xlu0 0
        %650 = vperm.xlu0 %649, %v306
        %v651 = vpop.permute.xlu0 %650
        %vm653 = vcmask 31744
        %v655 = vsel %vm653, %v303, 0
        %v658 = vsel %vm331, %v647, 0
        %660 = vmatprep.subr.mxu0 0.0
        %661 = vmatpush1.msra.mxu0 %v658
        %662 = vmatprep.subr.mxu0 0.0
        %663 = vmatpush1.msra.mxu0 0.0
        %664 = vmatprep.subr.mxu0 0.0
        %665 = vmatpush1.msra.mxu0 0.0
        %666 = vmatprep.subr.mxu0 0.0
        %667 = vmatpush1.msra.mxu0 0.0
        %668 = vmatprep.subr.mxu0 0.0
        %669 = vmatpush1.msra.mxu0 0.0
        %670 = vmatprep.subr.mxu0 0.0
        %671 = vmatpush1.msra.mxu0 0.0
        %672 = vmatprep.subr.mxu0 0.0
        %673 = vmatpush1.msra.mxu0 0.0
        %674 = vmatprep.subr.mxu0 0.0
        %675 = vmatpush1.msra.mxu0 0.0
        %676 = vmatprep.subr.mxu0 0.0
        %677 = vmatpush1.msra.mxu0 0.0
        %678 = vmatprep.subr.mxu0 0.0
        %679 = vmatpush1.msra.mxu0 0.0
        %680 = vmatprep.subr.mxu0 0.0
        %681 = vmatpush1.msra.mxu0 0.0
        %682 = vmatprep.subr.mxu0 0.0
        %683 = vmatpush1.msra.mxu0 0.0
        %684 = vmatprep.subr.mxu0 0.0
        %685 = vmatpush1.msra.mxu0 0.0
        %686 = vmatprep.subr.mxu0 0.0
        %687 = vmatpush1.msra.mxu0 0.0
        %688 = vmatprep.subr.mxu0 0.0
        %689 = vmatpush1.msra.mxu0 0.0
        %690 = vmatprep.subr.mxu0 0.0
        %691 = vmatpush1.msra.mxu0 0.0
        %692 = vmatprep.subr.mxu0 0.0
        %693 = vmatpush1.msra.mxu0 0.0
        %694 = vmatprep.subr.mxu0 0.0
        %695 = vmatpush1.msra.mxu0 0.0
        %696 = vmatprep.subr.mxu0 0.0
        %697 = vmatpush1.msra.mxu0 0.0
        %698 = vmatprep.subr.mxu0 0.0
        %699 = vmatpush1.msra.mxu0 0.0
        %700 = vmatprep.subr.mxu0 0.0
        %701 = vmatpush1.msra.mxu0 0.0
        %702 = vmatprep.subr.mxu0 0.0
        %703 = vmatpush1.msra.mxu0 0.0
        %704 = vmatprep.subr.mxu0 0.0
        %705 = vmatpush1.msra.mxu0 0.0
        %706 = vmatprep.subr.mxu0 0.0
        %707 = vmatpush1.msra.mxu0 0.0
        %708 = vmatprep.subr.mxu0 0.0
        %709 = vmatpush1.msra.mxu0 0.0
        %710 = vmatprep.subr.mxu0 0.0
        %711 = vmatpush1.msra.mxu0 0.0
        %712 = vmatprep.subr.mxu0 0.0
        %713 = vmatpush1.msra.mxu0 0.0
        %714 = vmatprep.subr.mxu0 0.0
        %715 = vmatpush1.msra.mxu0 0.0
        %716 = vmatprep.subr.mxu0 0.0
        %717 = vmatpush1.msra.mxu0 0.0
        %718 = vmatprep.subr.mxu0 0.0
        %719 = vmatpush1.msra.mxu0 0.0
        %720 = vmatprep.subr.mxu0 0.0
        %721 = vmatpush1.msra.mxu0 0.0
        %722 = vmatprep.subr.mxu0 0.0
        %723 = vmatpush1.msra.mxu0 0.0
        %724 = vmatprep.mubr.f32.mxu0 0.0
        %725 = vmatmul.mubr.f32.gmra.mrb[0].mxu0 %v655
        %v726 = vpop.f32.mrb[0].mxu0
        %v727 = vadd.f32 %v651, %v726
        %v728 = vpop.f32.mrb[0].mxu0
        %729 = vdwg.mxu0
        %v730 = vadd.f32 %v727, %v499
        %731 = vst.msk [vmem:[#allocation5] sm:$0xff] %vm406, %v730
        %v732 = vld [vmem:[#allocation5] sm:$0xff]
        %733 = vst [vmem:[%s296] sm:$0xff] %v732
        %s734 = sand.u32 %s203, 1
        %s735 = scalar_lea.sflag [#allocation7], %s734
        %s736 = sand.u32 %s203, 1
        %s737 = smul.addr %s736, 8
        %s738 = scalar_lea.vmem [#allocation6], %s737
        // Predicated region
        $region53: #{tpu_custom_call.1} parent=51 // pred_check
          %p739 = pneg %p213
        $region54: #{tpu_custom_call.1} parent=51 // pred_check_branch
          %741 = sbr.rel (%p739) target = $region56
        $region55: #{tpu_custom_call.1} parent=51 // pred_region
          %s743 = ssub.s32 128, 128
          %744 = vsyncadd %s735, %s743
          %s745 = smul.addr %s22, 128
          %s746 = scalar_lea.hbm %s8, %s745
          %s748 = sshll.u32 %s738, 4
          %s749 = int_to_ptr.vmem [resolvable:$true] %s748
          %751 = dma.vmem_to_hbm [thread:$0]  %s749, 128, %s746, %s735
        $region56: #{tpu_custom_call.1} parent=51 // pred_fallthru
          _
      $region52: #{tpu_custom_call.1} parent=5 // pred_fallthru
        _
      %p752 = scmp.le.s32.totalorder 2, %s17
      // Predicated region
      $region57: #{tpu_custom_call.1} parent=5 // pred_check
        %p753 = pneg %p752
      $region58: #{tpu_custom_call.1} parent=5 // pred_check_branch
        %755 = sbr.rel (%p753) target = $region60
      $region59: #{tpu_custom_call.1} parent=5 // pred_region
        %s756 = ssub.s32 %s17, 2
        // Predicated region
        $region61: #{tpu_custom_call.1} parent=59 // pred_check
          %p757 = pneg %p219
        $region62: #{tpu_custom_call.1} parent=59 // pred_check_branch
          %759 = sbr.rel (%p757) target = $region64
        $region63: #{tpu_custom_call.1} parent=59 // pred_region
          %s760 = sand.u32 %s204, 1
          %s761 = scalar_lea.sflag [#allocation7], %s760
          %s762 = sand.u32 %s204, 1
          %s763 = smul.addr %s762, 8
          %s764 = scalar_lea.vmem [#allocation6], %s763
          %765 = dma.done %s761, 128
        $region64: #{tpu_custom_call.1} parent=59 // pred_fallthru
          _
      $region60: #{tpu_custom_call.1} parent=5 // pred_fallthru
        _
    $region6: #{tpu_custom_call.1} parent=1 // loop_footer
      %s21 = sadd.s32 1, %s17
    $region7: #{tpu_custom_call.1} parent=1 // loop_footer_branch
      %16 = sbr.rel target = $region3
    $region8: #{tpu_custom_call.1} parent=1 // loop_exit
      _
    %766 = vsyncpa [#allocation7], 1
    %s767 = scalar_lea.sflag [#allocation7], 1
    %768 = vsyncpa %s767, 1

</llo_original>
